<compile_context>
chip_gen: v7x
topology: tpu7x:2x2x1
jax: 0.10.0
libtpu: 0.0.40
codegen_flags: <defaults>
</compile_context>

<pallas_src>
import functools
import numpy as np
import jax
import jax.numpy as jnp
from jax.experimental import pallas as pl
from jax.experimental.pallas import tpu as pltpu


def _complex_mse_kernel(p_ref, t_ref, o_ref, *, tile_rows, valid_rows,
                        steps_per_part, needs_mask):
    i = pl.program_id(1)  # reduction axis: row tiles within this partition

    @pl.when(i == 0)
    def _init():
        o_ref[...] = jnp.zeros_like(o_ref)

    p = p_ref[...].astype(jnp.float32)
    t = t_ref[...].astype(jnp.float32)
    d = p - t
    sq = d * d
    # (tile_rows,128) -> (tile_rows//8, 8, 128); axis-0 sum is pure VPU adds
    # into a single-vreg accumulator (the resident output block).
    sq3 = sq.reshape(tile_rows // 8, 8, 128)

    if needs_mask:
        # Mask rows past the valid extent (partial last tile and clamped
        # "overhang" steps). Pallas does not bounds-check partial blocks.
        # Gate with pl.when so the iota+compare+select only runs on steps that
        # can actually contain invalid rows.
        c = pl.program_id(0)
        row0 = (c * steps_per_part + i) * tile_rows
        has_invalid = row0 + tile_rows > valid_rows

        @pl.when(has_invalid)
        def _masked():
            row_ids = row0 + jax.lax.broadcasted_iota(
                jnp.int32, (tile_rows, 128), 0)
            # Keep the select form (NOT a multiplicative mask): garbage rows
            # may hold NaN/Inf and must be discarded, not multiplied by 0.
            sqm = jnp.where(row_ids < valid_rows, sq, 0.0)
            o_ref[...] += jnp.sum(sqm.reshape(tile_rows // 8, 8, 128), axis=0)

        @pl.when(jnp.logical_not(has_invalid))
        def _clean():
            o_ref[...] += jnp.sum(sq3, axis=0)
    else:
        o_ref[...] += jnp.sum(sq3, axis=0)


def _default_num_partitions():
    """2 on dual-TensorCore chips (v7x), else 1 (v5e / v6e single TC)."""
    try:
        kind = jax.devices()[0].device_kind.lower()
    except Exception:
        return 1
    return 2 if "v7" in kind else 1


def complex_mse_loss(pred, target, *, tile_rows=8192, num_partitions=None):
    """pred, target: arrays with shape [..., 2] (last dim = real/imag)."""
    assert pred.shape == target.shape, "pred/target shape mismatch"
    assert pred.shape[-1] == 2, "last dim must be 2 (real/imag)"

    n_complex = int(np.prod(pred.shape[:-1]))  # divisor of the mean

    def _prep(x):
        x = x.reshape(-1)
        if x.dtype not in (jnp.float32, jnp.bfloat16):
            x = x.astype(jnp.float32)
        return x

    p = _prep(pred)
    t = _prep(target)
    if p.dtype != t.dtype:
        # Mixed precision: promote both so sublane / streaming dtype agree.
        p = p.astype(jnp.float32)
        t = t.astype(jnp.float32)
    total = p.size

    sublane = 16 if p.dtype == jnp.bfloat16 else 8

    main = (total // 128) * 128
    rows = main // 128

    # Tiny inputs: a kernel launch is not worth it (also avoids blocks larger
    # than the array).
    if rows < sublane:
        d = p.astype(jnp.float32) - t.astype(jnp.float32)
        return jnp.sum(d * d) / jnp.float32(n_complex)

    # Ragged sub-128 tail handled in plain JAX (tiny slice).
    if main < total:
        dt = p[main:].astype(jnp.float32) - t[main:].astype(jnp.float32)
        tail_sum = jnp.sum(dt * dt)
        p_main = p[:main]
        t_main = t[:main]
    else:
        tail_sum = jnp.float32(0.0)
        p_main = p
        t_main = t

    p2 = p_main.reshape(rows, 128)  # free reshape, no pad copy
    t2 = t_main.reshape(rows, 128)

    # Effective tile: multiple of the sublane unit, never larger than the array.
    tr = min(int(tile_rows), rows)
    tr = max(sublane, (tr // sublane) * sublane)

    grid_steps = -(-rows // tr)  # ceil(rows / tr)
    if num_partitions is None:
        num_partitions = _default_num_partitions()
    P = max(1, min(int(num_partitions), grid_steps))  # parallel partitions
    spp = -(-grid_steps // P)                         # steps per partition
    needs_mask = (P * spp * tr != rows)

    def in_map(c, i):
        # Clamp so "overhang" steps (when P*spp > grid_steps) re-read the last
        # valid block; their contribution is masked to zero in the kernel.
        return (jnp.minimum(c * spp + i, grid_steps - 1), 0)

    kernel = functools.partial(
        _complex_mse_kernel,
        tile_rows=tr,
        valid_rows=rows,
        steps_per_part=spp,
        needs_mask=needs_mask,
    )

    itemsize = np.dtype(p2.dtype).itemsize
    cost = pl.CostEstimate(
        flops=3 * main,                        # sub + mul + add per element
        transcendentals=0,
        bytes_accessed=2 * main * itemsize + P * 8 * 128 * 4,
    )

    partials = pl.pallas_call(
        kernel,
        out_shape=jax.ShapeDtypeStruct((P * 8, 128), jnp.float32),
        grid_spec=pltpu.PrefetchScalarGridSpec(
            num_scalar_prefetch=0,
            grid=(P, spp),
            in_specs=[
                pl.BlockSpec((tr, 128), in_map),
                pl.BlockSpec((tr, 128), in_map),
            ],
            out_specs=pl.BlockSpec((8, 128), lambda c, i: (c, 0)),
        ),
        compiler_params=pltpu.CompilerParams(
            dimension_semantics=("parallel", "arbitrary"),
            # Big tiles (16 MiB double-buffered f32 inputs at tr=8192) exceed
            # v5e's 16 MiB scoped default; 48 MiB fits all generations with
            # headroom under v7x's 64 MiB physical VMEM per TC.
            vmem_limit_bytes=48 * 1024 * 1024,
        ),
        cost_estimate=cost,
    )(p2, t2)

    # Single cross-lane reduction, once, on a tiny (P*8,128) array.
    return (jnp.sum(partials) + tail_sum) / jnp.float32(n_complex)


if __name__ == "__main__":
    key = jax.random.PRNGKey(0)

    def _reference(pred, target):
        pred = pred.astype(jnp.float32)
        target = target.astype(jnp.float32)
        return jnp.mean(
            (pred[..., 0] - target[..., 0]) ** 2
            + (pred[..., 1] - target[..., 1]) ** 2
        )

    # (shape, dtype, kwargs, tol) — exercise clean, masked, overhang (P=2),
    # multi-step and bf16 streaming paths.
    cases = [
        ((2, 4, 16, 16, 2), jnp.float32, {}, 1e-5),
        ((5, 9, 16, 2), jnp.float32, {}, 1e-5),                # partial tile + ragged tail
        ((10, 128, 2), jnp.float32,
         {"tile_rows": 8, "num_partitions": 2}, 1e-5),         # overhang (clamped) blocks
        ((4, 64, 128, 2), jnp.float32, {"tile_rows": 128}, 1e-5),  # multi-step accumulation
        ((4, 16, 16, 16, 2), jnp.bfloat16, {}, 1e-4),          # bf16 streaming (sublane 16)
    ]

    ok = True
    for idx, (shape, dtype, kwargs, tol) in enumerate(cases):
        k1, k2 = jax.random.split(jax.random.fold_in(key, idx))
        pred = jax.random.normal(k1, shape, dtype=jnp.float32).astype(dtype)
        target = jax.random.normal(k2, shape, dtype=jnp.float32).astype(dtype)

        loss = jax.block_until_ready(complex_mse_loss(pred, target, **kwargs))
        ref = jax.block_until_ready(_reference(pred, target))

        if not np.allclose(np.asarray(loss), np.asarray(ref),
                           rtol=tol, atol=tol):
            ok = False
            print("MISMATCH", shape, str(dtype), float(loss), float(ref))

    if ok:
        print("KERNEL_OK")
</pallas_src>

<mosaic_0001>
module attributes {stable_mosaic.version = 11 : i64} {
  func.func @_complex_mse_kernel(%arg0: i32, %arg1: i32, %arg2: memref<32x128xf32, #tpu.memory_space<vmem>>, %arg3: memref<32x128xf32, #tpu.memory_space<vmem>>, %arg4: memref<8x128xf32, #tpu.memory_space<vmem>>) attributes {dimension_semantics = [#tpu.dimension_semantics<parallel>, #tpu.dimension_semantics<arbitrary>], iteration_bounds = array<i64: 1, 1>, scalar_prefetch = 0 : i64, scratch_operands = 0 : i64, tpu.core_type = #tpu.core_type<tc>, window_params = [{transform_indices = @transform_0, window_bounds = array<i64: 32, 128>}, {transform_indices = @transform_1, window_bounds = array<i64: 32, 128>}, {transform_indices = @transform_2, window_bounds = array<i64: 8, 128>}]} {
    %c0_i32 = arith.constant 0 : i32
    %0 = arith.cmpi eq, %arg1, %c0_i32 : i32
    %1 = arith.extui %0 : i1 to i32
    %c0_i32_0 = arith.constant 0 : i32
    %2 = arith.cmpi ne, %1, %c0_i32_0 : i32
    scf.if %2 {
      %cst_8 = arith.constant 0.000000e+00 : f32
      %12 = vector.broadcast %cst_8 : f32 to vector<8x128xf32>
      %c0_9 = arith.constant 0 : index
      %c0_10 = arith.constant 0 : index
      %13 = vector.load %arg4[%c0_9, %c0_10] : memref<8x128xf32, #tpu.memory_space<vmem>>, vector<8x128xf32>
      tpu.vector_store %arg4[%c0_9, %c0_10], %12 {strides = array<i32>} : memref<8x128xf32, #tpu.memory_space<vmem>>, vector<8x128xf32>,
    } else {
    }
    %c0 = arith.constant 0 : index
    %c0_1 = arith.constant 0 : index
    %3 = vector.load %arg2[%c0, %c0_1] : memref<32x128xf32, #tpu.memory_space<vmem>>, vector<32x128xf32>
    %c0_2 = arith.constant 0 : index
    %c0_3 = arith.constant 0 : index
    %4 = vector.load %arg3[%c0_2, %c0_3] : memref<32x128xf32, #tpu.memory_space<vmem>>, vector<32x128xf32>
    %5 = arith.subf %3, %4 : vector<32x128xf32>
    %6 = arith.mulf %5, %5 : vector<32x128xf32>
    %7 = vector.shape_cast %6 : vector<32x128xf32> to vector<4x8x128xf32>
    %c0_4 = arith.constant 0 : index
    %c0_5 = arith.constant 0 : index
    %8 = vector.load %arg4[%c0_4, %c0_5] : memref<8x128xf32, #tpu.memory_space<vmem>>, vector<8x128xf32>
    %cst = arith.constant dense<0.000000e+00> : vector<8x128xf32>
    %9 = vector.multi_reduction <add>, %7, %cst [0] : vector<4x8x128xf32> to vector<8x128xf32>
    %10 = arith.addf %8, %9 : vector<8x128xf32>
    %c0_6 = arith.constant 0 : index
    %c0_7 = arith.constant 0 : index
    %11 = vector.load %arg4[%c0_6, %c0_7] : memref<8x128xf32, #tpu.memory_space<vmem>>, vector<8x128xf32>
    tpu.vector_store %arg4[%c0_6, %c0_7], %10 {strides = array<i32>} : memref<8x128xf32, #tpu.memory_space<vmem>>, vector<8x128xf32>,
    return
  }
  func.func @transform_0(%arg0: i32, %arg1: i32) -> (i32, i32) {
    %c1_i32 = arith.constant 1 : i32
    %0 = arith.muli %arg0, %c1_i32 : i32
    %1 = arith.addi %0, %arg1 : i32
    %c0_i32 = arith.constant 0 : i32
    %2 = arith.minsi %1, %c0_i32 : i32
    %c0_i32_0 = arith.constant 0 : i32
    %c0_i32_1 = arith.constant 0 : i32
    return %2, %c0_i32_0 : i32, i32
  }
  func.func @transform_1(%arg0: i32, %arg1: i32) -> (i32, i32) {
    %c1_i32 = arith.constant 1 : i32
    %0 = arith.muli %arg0, %c1_i32 : i32
    %1 = arith.addi %0, %arg1 : i32
    %c0_i32 = arith.constant 0 : i32
    %2 = arith.minsi %1, %c0_i32 : i32
    %c0_i32_0 = arith.constant 0 : i32
    %c0_i32_1 = arith.constant 0 : i32
    return %2, %c0_i32_0 : i32, i32
  }
  func.func @transform_2(%arg0: i32, %arg1: i32) -> (i32, i32) {
    %c0_i32 = arith.constant 0 : i32
    %c0_i32_0 = arith.constant 0 : i32
    return %arg0, %c0_i32 : i32, i32
  }
}

</mosaic_0001>

<llo_original>
// kernel: tpu_custom_call.1
$region0: #{tpu_custom_call.1}
  #allocation0 [shape = 'u32[]', space=smem, size = 0x4, offset = 0x4, fixed_abs, tag = 'smem constant byte address 0x4 - core index']
  #allocation1 [shape = 'u32[144,128]{1,0:T(1,128)}', space=vmem, size = 0x12000, scoped, tag = 'internal scratch']
  %s0 = inlined_call_operand.hbm [shape: f32[32,128], index: 0, kind: input, shape index: {}]
  %s1 = inlined_call_operand.hbm [shape: f32[32,128], index: 1, kind: input, shape index: {}]
  %s2 = inlined_call_operand.hbm [shape: f32[8,128], index: 2, kind: output, shape index: {}]
  %s3 = sld [smem:[#allocation0]]
  $region30: #{tpu_custom_call.1} parent=0
    _
  %s5 = ssub.s32 1, %s3
  %s6 = scalar_select 0, %s5, %s3
  $region1: #{tpu_custom_call.1} parent=0
    #allocation2 [shape = 'u8[16384]{0}', space=vmem, size = 0x4000, scoped, tag = 'input window, operand 0, single buffered']
    #allocation3 [shape = 's32[1]{0}', space=sflag, size = 0x4, scoped, tag = 'scoped memory for tpu_custom_call.1']
    #allocation4 [shape = 's32[1]{0}', space=sflag, size = 0x4, scoped, tag = 'scoped memory for tpu_custom_call.1']
    #allocation5 [shape = 'u8[16384]{0}', space=vmem, size = 0x4000, scoped, tag = 'input window, operand 1, single buffered']
    #allocation6 [shape = 's32[1]{0}', space=sflag, size = 0x4, scoped, tag = 'scoped memory for tpu_custom_call.1']
    #allocation7 [shape = 'u8[4096]{0}', space=vmem, size = 0x1000, scoped, tag = 'output window, operand 0, single buffered']
    %7 = vsyncpa [#allocation3], 0
    %8 = vsyncpa [#allocation6], 0
    %9 = vsyncpa [#allocation4], 0
    // Predicated region
    $region2: #{tpu_custom_call.1} parent=1 // pred_check
      _
    $region3: #{tpu_custom_call.1} parent=1 // pred_check_branch
      %11 = sbr.rel (0) target = $region5
    $region4: #{tpu_custom_call.1} parent=1 // pred_region
      %s12 = sadd.s32 0, 0
      %p13 = scmp.lt.s32.totalorder %s12, 0
      %s14 = scalar_select %p13, %s12, 0
      %s15 = smul.u32 4, %s14
      %s17 = ssub.s32 512, 512
      %18 = vsyncadd [#allocation3], %s17
      %s19 = smul.addr %s15, 128
      %s20 = scalar_lea.hbm %s0, %s19
      %s21 = sshll.u32 [#allocation2], 4
      %s22 = int_to_ptr.vmem [resolvable:$true] %s21
      %27 = dma.hbm_to_vmem [thread:$0]  %s20, 512, %s22, [#allocation3], 128, 128, 8
    $region5: #{tpu_custom_call.1} parent=1 // pred_fallthru
      _
    // Predicated region
    $region6: #{tpu_custom_call.1} parent=1 // pred_check
      _
    $region7: #{tpu_custom_call.1} parent=1 // pred_check_branch
      %29 = sbr.rel (0) target = $region9
    $region8: #{tpu_custom_call.1} parent=1 // pred_region
      %s30 = sadd.s32 0, 0
      %p31 = scmp.lt.s32.totalorder %s30, 0
      %s32 = scalar_select %p31, %s30, 0
      %s33 = smul.u32 4, %s32
      %s35 = ssub.s32 512, 512
      %36 = vsyncadd [#allocation6], %s35
      %s37 = smul.addr %s33, 128
      %s38 = scalar_lea.hbm %s1, %s37
      %s39 = sshll.u32 [#allocation5], 4
      %s40 = int_to_ptr.vmem [resolvable:$true] %s39
      %45 = dma.hbm_to_vmem [thread:$0]  %s38, 512, %s40, [#allocation6], 128, 128, 8
    $region9: #{tpu_custom_call.1} parent=1 // pred_fallthru
      _
    // Predicated region
    $region10: #{tpu_custom_call.1} parent=1 // pred_check
      _
    $region11: #{tpu_custom_call.1} parent=1 // pred_check_branch
      %47 = sbr.rel (0) target = $region13
    $region12: #{tpu_custom_call.1} parent=1 // pred_region
      %48 = dma.done [#allocation3], 512
    $region13: #{tpu_custom_call.1} parent=1 // pred_fallthru
      _
    // Predicated region
    $region14: #{tpu_custom_call.1} parent=1 // pred_check
      _
    $region15: #{tpu_custom_call.1} parent=1 // pred_check_branch
      %50 = sbr.rel (0) target = $region17
    $region16: #{tpu_custom_call.1} parent=1 // pred_region
      %51 = dma.done [#allocation6], 512
    $region17: #{tpu_custom_call.1} parent=1 // pred_fallthru
      _
    %s52 = sadd.s32 0, 0
    %p53 = scmp.lt.s32.totalorder %s52, 0
    %s54 = scalar_select %p53, %s52, 0
    %s55 = smul.u32 4, %s54
    %s56 = sadd.s32 0, 0
    %p57 = scmp.lt.s32.totalorder %s56, 0
    %s58 = scalar_select %p57, %s56, 0
    %s59 = smul.u32 4, %s58
    %p60 = scmp.eq.s32.totalorder 0, 0
    // Predicated region
    $region18: #{tpu_custom_call.1} parent=1 // pred_check
      %p61 = pneg %p60
    $region19: #{tpu_custom_call.1} parent=1 // pred_check_branch
      %63 = sbr.rel (%p61) target = $region21
    $region20: #{tpu_custom_call.1} parent=1 // pred_region
      %64 = vst [vmem:[#allocation7] sm:$0xff] 0.0
    $region21: #{tpu_custom_call.1} parent=1 // pred_fallthru
      _
    %v65 = vld [vmem:[#allocation2] sm:$0xff]
    %v66 = vld [vmem:[#allocation2 + $0x8] sm:$0xff]
    %v67 = vld [vmem:[#allocation2 + $0x10] sm:$0xff]
    %v68 = vld [vmem:[#allocation2 + $0x18] sm:$0xff]
    %v69 = vld [vmem:[#allocation5] sm:$0xff]
    %v70 = vld [vmem:[#allocation5 + $0x8] sm:$0xff]
    %v71 = vld [vmem:[#allocation5 + $0x10] sm:$0xff]
    %v72 = vld [vmem:[#allocation5 + $0x18] sm:$0xff]
    %v73 = vsub.f32 %v65, %v69
    %v74 = vsub.f32 %v66, %v70
    %v75 = vsub.f32 %v67, %v71
    %v76 = vsub.f32 %v68, %v72
    %v77 = vmul.f32 %v73, %v73
    %v78 = vmul.f32 %v74, %v74
    %v79 = vmul.f32 %v75, %v75
    %v80 = vmul.f32 %v76, %v76
    %v81 = vld [vmem:[#allocation7] sm:$0xff]
    %v82 = vadd.f32 %v77, %v78
    %v83 = vadd.f32 %v82, %v79
    %v84 = vadd.f32 %v83, %v80
    %v85 = vadd.f32 %v81, %v84
    %86 = vst [vmem:[#allocation7] sm:$0xff] %v85
    // Predicated region
    $region22: #{tpu_custom_call.1} parent=1 // pred_check
      _
    $region23: #{tpu_custom_call.1} parent=1 // pred_check_branch
      %88 = sbr.rel (0) target = $region25
    $region24: #{tpu_custom_call.1} parent=1 // pred_region
      %s90 = ssub.s32 128, 128
      %91 = vsyncadd [#allocation4], %s90
      %s93 = sshll.u32 [#allocation7], 4
      %s94 = int_to_ptr.vmem [resolvable:$true] %s93
      %96 = dma.vmem_to_hbm [thread:$0]  %s94, 128, %s2, [#allocation4]
    $region25: #{tpu_custom_call.1} parent=1 // pred_fallthru
      _
    // Predicated region
    $region26: #{tpu_custom_call.1} parent=1 // pred_check
      _
    $region27: #{tpu_custom_call.1} parent=1 // pred_check_branch
      %98 = sbr.rel (0) target = $region29
    $region28: #{tpu_custom_call.1} parent=1 // pred_region
      %99 = dma.done [#allocation4], 128
    $region29: #{tpu_custom_call.1} parent=1 // pred_fallthru
      _
    %100 = vsyncpa [#allocation3], 1
    %101 = vsyncpa [#allocation6], 1
    %102 = vsyncpa [#allocation4], 1

</llo_original>
